<compile_context>
chip_gen: v7x
topology: tpu7x:2x2x1
jax: 0.10.0
libtpu: 0.0.40
codegen_flags: <defaults>
</compile_context>

<pallas_src>
import functools
import math

import jax
import jax.numpy as jnp
from jax import lax
from jax.experimental import pallas as pl
from jax.experimental.pallas import tpu as pltpu

_LANES = 128


def _sublane_multiple(dtype) -> int:
    """Rows per fully-packed sublane group for this dtype."""
    itemsize = jnp.dtype(dtype).itemsize
    return {4: 8, 2: 16, 1: 32}.get(itemsize, 8)


def _repeat_kernel(x_ref, o_ref, *, tr: int, d: int, chunk: int):
    # x_ref: (tb, d) input tile, DMA'd once per batch tile.
    # o_ref: (tb, tr*d) lane-dense output slab for this grid step.
    x = x_ref[...]
    if chunk == 1:
        slab = x
    else:
        # Staging slab of `chunk` reps, built once and stored repeatedly.
        # chunk is chosen so chunk*d is a multiple of 128 lanes whenever
        # possible -> every full-chunk store below is unmasked and aligned.
        slab = jnp.concatenate([x] * chunk, axis=-1)          # (tb, chunk*d)

    cw = chunk * d
    nfull = tr // chunk

    if nfull <= 64:
        # Static unroll: small, fixed number of wide stores.
        for c in range(nfull):
            o_ref[:, c * cw:(c + 1) * cw] = slab
    else:
        # Large rep counts: rolled loop, never materializing the full slab.
        def body(c, carry):
            off = c * cw
            if cw % _LANES == 0:
                off = pl.multiple_of(off, _LANES)
            o_ref[:, pl.ds(off, cw)] = slab
            return carry

        lax.fori_loop(0, nfull, body, 0, unroll=8)

    tail = tr - nfull * chunk
    if tail:
        start = nfull * cw
        o_ref[:, start:start + tail * d] = slab[:, :tail * d]


def repeat_pallas(x: jax.Array, reps: int) -> jax.Array:
    """Pallas kernel equivalent of torch: x.unsqueeze(1).repeat(1, reps, 1)."""
    B, D = x.shape
    dtype = x.dtype
    itemsize = jnp.dtype(dtype).itemsize
    if reps == 0:
        return jnp.zeros((B, 0, D), dtype=dtype)

    sub = _sublane_multiple(dtype)

    # Generation-aware working-set budget.  The pipeline double-buffers both
    # the input tile and the output tile, so working set ~ 2*tb*D*(1+tr)*B.
    try:
        vmem_cap = pltpu.get_tpu_info().vmem_capacity_bytes
    except Exception:  # pragma: no cover - conservative fallback (v7x per-TC)
        vmem_cap = 64 * 1024 * 1024
    ws_budget = min(vmem_cap // 8, 12 * 1024 * 1024)

    k = _LANES // math.gcd(D, _LANES)   # smallest rep count with 128-lane width
    row_in = D * itemsize

    # --- batch tile -------------------------------------------------------
    if B <= 512:
        tb = B                           # full-dim block: always layout-legal
    else:
        tb = 512                         # multiple of 8/16/32 sublanes

    # --- reps per output tile ----------------------------------------------
    denom = 2 * tb * row_in              # double-buffered bytes per (1 rep)
    tr_budget = ws_budget // denom - 1   # leave room for the input tile
    if tr_budget >= reps:
        tr = reps
    elif tr_budget >= k:
        tr = (tr_budget // k) * k        # lane-aligned split of the rep axis
    else:
        # Output rows too wide at this tb: shrink the batch tile instead.
        tr = min(reps, k)
        tb_fit = ws_budget // (2 * row_in * (1 + tr))
        tb = min(B, max(sub, (tb_fit // sub) * sub))

    n_b = pl.cdiv(B, tb)
    n_r = pl.cdiv(reps, tr)

    # v7x megacore: guarantee >= 2 parallel grid steps when the output is big
    # enough to care (2 TCs share per-chip HBM write bandwidth).
    out_bytes = B * reps * D * itemsize
    if n_b * n_r == 1 and out_bytes > (2 << 20) and B >= 2 * sub:
        half = (B + 1) // 2
        tb = max(sub, ((half + sub - 1) // sub) * sub)
        n_b = pl.cdiv(B, tb)

    # Aligned store granule; fall back to per-rep stores if the staging slab
    # would be unreasonably large (pathological D values).
    chunk = min(tr, k)
    if chunk > 1 and tb * chunk * D * itemsize > (2 << 20):
        chunk = 1

    kernel = functools.partial(_repeat_kernel, tr=tr, d=D, chunk=chunk)

    out_flat = pl.pallas_call(
        kernel,
        out_shape=jax.ShapeDtypeStruct((B, reps * D), dtype),
        grid_spec=pltpu.PrefetchScalarGridSpec(
            num_scalar_prefetch=0,
            grid=(n_b, n_r),
            # x tile does not change while the rep axis (j) varies -> single DMA.
            in_specs=[pl.BlockSpec((tb, D), lambda i, j: (i, 0))],
            out_specs=pl.BlockSpec((tb, tr * D), lambda i, j: (i, j)),
        ),
        compiler_params=pltpu.CompilerParams(
            dimension_semantics=("parallel", "parallel")),
        cost_estimate=pl.CostEstimate(
            flops=0, transcendentals=0,
            bytes_accessed=(1 + reps) * B * D * itemsize),
    )(x)

    # Metadata-only reshape back to the PyTorch (B, reps, D) layout.
    return out_flat.reshape(B, reps, D)


def repeat(x: jax.Array, reps: int, *, min_pallas_bytes: int = 256 * 1024):
    """Size-gated entry point: tiny inputs skip the kernel entirely."""
    B, D = x.shape
    out_bytes = B * reps * D * jnp.dtype(x.dtype).itemsize
    if reps == 0 or out_bytes < min_pallas_bytes:
        # pallas_call launch + per-step overhead dwarfs copying a few KiB;
        # XLA's broadcast usually fuses into the consumer for free.
        return jnp.broadcast_to(x[:, None, :], (B, reps, D))
    return repeat_pallas(x, reps)


if __name__ == "__main__":
    key = jax.random.PRNGKey(0)
    B, D = 2, 32
    reps = 3                      # Repeat(reps=3)
    x = jax.random.normal(key, (B, D), dtype=jnp.float32)

    # Exercise the Pallas kernel itself (even though shapes are tiny).
    out = jax.block_until_ready(repeat_pallas(x, reps))

    ref = jnp.broadcast_to(x[:, None, :], (B, reps, D))
    assert out.shape == (B, reps, D), out.shape
    assert out.dtype == x.dtype
    assert jnp.array_equal(out, ref), "pallas kernel mismatch vs reference"

    # Auto wrapper (falls back to XLA broadcast at this size) must also match.
    out2 = jax.block_until_ready(repeat(x, reps))
    assert jnp.array_equal(out2, ref), "auto wrapper mismatch vs reference"

    print("KERNEL_OK")
</pallas_src>

<mosaic_0001>
module attributes {stable_mosaic.version = 11 : i64} {
  func.func @_repeat_kernel(%arg0: i32, %arg1: i32, %arg2: memref<2x32xf32, #tpu.memory_space<vmem>>, %arg3: memref<2x96xf32, #tpu.memory_space<vmem>>) attributes {dimension_semantics = [#tpu.dimension_semantics<parallel>, #tpu.dimension_semantics<parallel>], iteration_bounds = array<i64: 1, 1>, scalar_prefetch = 0 : i64, scratch_operands = 0 : i64, tpu.core_type = #tpu.core_type<tc>, window_params = [{transform_indices = @transform_0, window_bounds = array<i64: 2, 32>}, {transform_indices = @transform_1, window_bounds = array<i64: 2, 96>}]} {
    %c0 = arith.constant 0 : index
    %c0_0 = arith.constant 0 : index
    %0 = vector.load %arg2[%c0, %c0_0] : memref<2x32xf32, #tpu.memory_space<vmem>>, vector<2x32xf32>
    %1 = tpu.concatenate %0, %0, %0 in 1 : vector<2x32xf32>, vector<2x32xf32>, vector<2x32xf32> -> vector<2x96xf32>
    %c0_1 = arith.constant 0 : index
    %c0_2 = arith.constant 0 : index
    %2 = vector.load %arg3[%c0_1, %c0_2] : memref<2x96xf32, #tpu.memory_space<vmem>>, vector<2x96xf32>
    tpu.vector_store %arg3[%c0_1, %c0_2], %1 {strides = array<i32>} : memref<2x96xf32, #tpu.memory_space<vmem>>, vector<2x96xf32>,
    return
  }
  func.func @transform_0(%arg0: i32, %arg1: i32) -> (i32, i32) {
    %c0_i32 = arith.constant 0 : i32
    %c0_i32_0 = arith.constant 0 : i32
    return %arg0, %c0_i32 : i32, i32
  }
  func.func @transform_1(%arg0: i32, %arg1: i32) -> (i32, i32) {
    %c0_i32 = arith.constant 0 : i32
    return %arg0, %arg1 : i32, i32
  }
}

</mosaic_0001>

<llo_original>
// kernel: tpu_custom_call.1
$region0: #{tpu_custom_call.1}
  #allocation0 [shape = 'u32[]', space=smem, size = 0x4, offset = 0x4, fixed_abs, tag = 'smem constant byte address 0x4 - core index']
  #allocation1 [shape = 'u32[144,128]{1,0:T(1,128)}', space=vmem, size = 0x12000, scoped, tag = 'internal scratch']
  %s0 = inlined_call_operand.hbm [shape: f32[2,32], index: 0, kind: input, shape index: {}]
  %s1 = inlined_call_operand.hbm [shape: f32[2,96], index: 1, kind: output, shape index: {}]
  %s2 = sld [smem:[#allocation0]]
  $region18: #{tpu_custom_call.1} parent=0
    _
  %s4 = ssub.s32 1, %s2
  %s5 = scalar_select 0, %s4, %s2
  $region1: #{tpu_custom_call.1} parent=0
    #allocation2 [shape = 'u8[1024]{0}', space=vmem, size = 0x400, scoped, tag = 'input window, operand 0, single buffered']
    #allocation3 [shape = 's32[1]{0}', space=sflag, size = 0x4, scoped, tag = 'scoped memory for tpu_custom_call.1']
    #allocation4 [shape = 's32[1]{0}', space=sflag, size = 0x4, scoped, tag = 'scoped memory for tpu_custom_call.1']
    #allocation5 [shape = 'u8[1024]{0}', space=vmem, size = 0x400, scoped, tag = 'output window, operand 0, single buffered']
    %6 = vsyncpa [#allocation3], 0
    %7 = vsyncpa [#allocation4], 0
    // Predicated region
    $region2: #{tpu_custom_call.1} parent=1 // pred_check
      _
    $region3: #{tpu_custom_call.1} parent=1 // pred_check_branch
      %9 = sbr.rel (0) target = $region5
    $region4: #{tpu_custom_call.1} parent=1 // pred_region
      %s11 = ssub.s32 32, 32
      %12 = vsyncadd [#allocation3], %s11
      %s14 = sshll.u32 [#allocation2], 4
      %s15 = int_to_ptr.vmem [resolvable:$true] %s14
      %17 = dma.hbm_to_vmem [thread:$0]  %s0, 32, %s15, [#allocation3]
    $region5: #{tpu_custom_call.1} parent=1 // pred_fallthru
      _
    // Predicated region
    $region6: #{tpu_custom_call.1} parent=1 // pred_check
      _
    $region7: #{tpu_custom_call.1} parent=1 // pred_check_branch
      %19 = sbr.rel (0) target = $region9
    $region8: #{tpu_custom_call.1} parent=1 // pred_region
      %20 = dma.done [#allocation3], 32
    $region9: #{tpu_custom_call.1} parent=1 // pred_fallthru
      _
    %v21 = vld [vmem:[#allocation2] sm:$0x3]
    %23 = vrot.lane.b32.xlu0 %v21, 32
    %v24 = vpop.permute.xlu0 %23
    %26 = vrot.lane.b32.xlu0 %v21, 64
    %v27 = vpop.permute.xlu0 %26
    %vm29 = vcmask 261120
    %v30 = vsel %vm29, %v21, %v24
    %vm31 = vcmask 523264
    %v32 = vsel %vm31, %v30, %v27
    %vm33 = vcmask 779264
    %34 = vst.msk [vmem:[#allocation5] sm:$0x3] %vm33, %v32
    // Predicated region
    $region10: #{tpu_custom_call.1} parent=1 // pred_check
      _
    $region11: #{tpu_custom_call.1} parent=1 // pred_check_branch
      %36 = sbr.rel (0) target = $region13
    $region12: #{tpu_custom_call.1} parent=1 // pred_region
      %s38 = ssub.s32 32, 32
      %39 = vsyncadd [#allocation4], %s38
      %s41 = sshll.u32 [#allocation5], 4
      %s42 = int_to_ptr.vmem [resolvable:$true] %s41
      %44 = dma.vmem_to_hbm [thread:$0]  %s42, 32, %s1, [#allocation4]
    $region13: #{tpu_custom_call.1} parent=1 // pred_fallthru
      _
    // Predicated region
    $region14: #{tpu_custom_call.1} parent=1 // pred_check
      _
    $region15: #{tpu_custom_call.1} parent=1 // pred_check_branch
      %46 = sbr.rel (0) target = $region17
    $region16: #{tpu_custom_call.1} parent=1 // pred_region
      %47 = dma.done [#allocation4], 32
    $region17: #{tpu_custom_call.1} parent=1 // pred_fallthru
      _
    %48 = vsyncpa [#allocation3], 1
    %49 = vsyncpa [#allocation4], 1

</llo_original>
